<compile_context>
chip_gen: v6e
topology: v6e:2x2x1
jax: 0.10.0
libtpu: 0.0.40
codegen_flags: <defaults>
</compile_context>

<pallas_src>
import jax
import jax.numpy as jnp
from jax.experimental import pallas as pl
from jax.experimental.pallas import tpu as pltpu


def _mlp_kernel(x_ref, w_ref, b_ref, o_ref):
    # x_ref: (B, K) f32    w_ref: (K, N) bf16 (pre-transposed at init)
    # b_ref: (1, N) f32    o_ref: (B, N) f32
    x_bf16 = x_ref[...].astype(jnp.bfloat16)                 # cheap VPU cast (x is tiny)
    acc = jnp.dot(x_bf16, w_ref[...],
                  preferred_element_type=jnp.float32)        # MXU bf16, f32 accumulate
    acc = acc + b_ref[...]                                   # bias broadcast over batch
    o_ref[...] = jnp.maximum(acc, 0.0).astype(o_ref.dtype)   # ReLU


def mlp_token_projection(x, weight_kn_bf16, bias, num_tokens, token_dim):
    """x: (B, 3, H, W) f32; weight_kn_bf16: (in, out) bf16 (transposed/cast once at init);
    bias: (out,) f32. Returns (B, num_tokens, token_dim) f32."""
    B = x.shape[0]
    in_features = x.shape[1] * x.shape[2] * x.shape[3]
    out_features = num_tokens * token_dim
    assert weight_kn_bf16.shape == (in_features, out_features)
    assert bias.shape == (out_features,)

    x_flat = x.reshape(B, in_features)            # nn.Flatten (row-major, matches torch)
    b2d = bias.reshape(1, out_features)

    out = pl.pallas_call(
        _mlp_kernel,
        out_shape=jax.ShapeDtypeStruct((B, out_features), jnp.float32),
        grid_spec=pltpu.PrefetchScalarGridSpec(
            num_scalar_prefetch=0,
            grid=(1,),
            in_specs=[
                pl.BlockSpec((B, in_features), lambda i: (0, 0)),
                pl.BlockSpec((in_features, out_features), lambda i: (0, 0)),
                pl.BlockSpec((1, out_features), lambda i: (0, 0)),
            ],
            out_specs=pl.BlockSpec((B, out_features), lambda i: (0, 0)),
        ),
        compiler_params=pltpu.CompilerParams(
            dimension_semantics=("arbitrary",)),
    )(x_flat, weight_kn_bf16, b2d)

    # Rearrange 'b (n d) -> b n d' (wrapper-side, free; keeps kernel stores lane-dense)
    return out.reshape(B, num_tokens, token_dim)


if __name__ == "__main__":
    img_size = 16
    num_tokens = 8
    token_dim = 32
    batch = 2

    in_features = img_size * img_size * 3        # 768
    out_features = num_tokens * token_dim        # 256

    key = jax.random.PRNGKey(0)
    kx, kw, kb = jax.random.split(key, 3)

    # Deterministic parameter init (PyTorch-Linear-style uniform bound), (out, in) layout.
    bound = 1.0 / jnp.sqrt(in_features)
    weight_f32 = jax.random.uniform(kw, (out_features, in_features),
                                    minval=-bound, maxval=bound, dtype=jnp.float32)
    bias = jax.random.uniform(kb, (out_features,),
                              minval=-bound, maxval=bound, dtype=jnp.float32)

    # Prepare the weight ONCE (parameter-init time): transpose to (in, out) and cast to
    # bf16. Reused on every call -> no per-call transpose or cast traffic in HBM.
    weight_kn_bf16 = weight_f32.T.astype(jnp.bfloat16)

    x = jax.random.normal(kx, (batch, 3, img_size, img_size), dtype=jnp.float32)

    out = mlp_token_projection(x, weight_kn_bf16, bias, num_tokens, token_dim)
    out = jax.block_until_ready(out)
    assert out.shape == (batch, num_tokens, token_dim)

    # Reference 1: same bf16-rounded operands, f32 math -> tight check of the kernel.
    x_flat_bf = x.reshape(batch, -1).astype(jnp.bfloat16).astype(jnp.float32)
    w_bf = weight_kn_bf16.astype(jnp.float32)
    ref_bf = jnp.maximum(x_flat_bf @ w_bf + bias, 0.0).reshape(batch, num_tokens, token_dim)
    assert jnp.allclose(out, ref_bf, atol=1e-3, rtol=1e-3)

    # Reference 2: original full-f32 PyTorch semantics -> loose check (bf16 weight quant).
    ref_f32 = jnp.maximum(x.reshape(batch, -1) @ weight_f32.T + bias, 0.0)
    ref_f32 = ref_f32.reshape(batch, num_tokens, token_dim)
    assert jnp.allclose(out, ref_f32, atol=3e-2, rtol=3e-2)

    print("KERNEL_OK")
</pallas_src>

<mosaic_0001>
module attributes {stable_mosaic.version = 11 : i64} {
  func.func @_mlp_kernel(%arg0: i32, %arg1: memref<2x768xf32, #tpu.memory_space<vmem>>, %arg2: memref<768x256xbf16, #tpu.memory_space<vmem>>, %arg3: memref<1x256xf32, #tpu.memory_space<vmem>>, %arg4: memref<2x256xf32, #tpu.memory_space<vmem>>) attributes {dimension_semantics = [#tpu.dimension_semantics<arbitrary>], iteration_bounds = array<i64: 1>, scalar_prefetch = 0 : i64, scratch_operands = 0 : i64, tpu.core_type = #tpu.core_type<tc>, window_params = [{pipeline_mode = #tpu.pipeline_mode<synchronous>, transform_indices = @transform_0, window_bounds = array<i64: 2, 768>}, {pipeline_mode = #tpu.pipeline_mode<synchronous>, transform_indices = @transform_1, window_bounds = array<i64: 768, 256>}, {pipeline_mode = #tpu.pipeline_mode<synchronous>, transform_indices = @transform_2, window_bounds = array<i64: 1, 256>}, {pipeline_mode = #tpu.pipeline_mode<synchronous>, transform_indices = @transform_3, window_bounds = array<i64: 2, 256>}]} {
    %c0 = arith.constant 0 : index
    %c0_0 = arith.constant 0 : index
    %0 = vector.load %arg1[%c0, %c0_0] : memref<2x768xf32, #tpu.memory_space<vmem>>, vector<2x768xf32>
    %1 = arith.truncf %0 : vector<2x768xf32> to vector<2x768xbf16>
    %c0_1 = arith.constant 0 : index
    %c0_2 = arith.constant 0 : index
    %2 = vector.load %arg2[%c0_1, %c0_2] : memref<768x256xbf16, #tpu.memory_space<vmem>>, vector<768x256xbf16>
    %cst = arith.constant dense<0.000000e+00> : vector<2x256xf32>
    %3 = tpu.matmul %1, %2, %cst {dimension_numbers = #tpu.dot_dimension_numbers<[1], [0], [0], [1], [0, 0, 1, 1], [], []>} : vector<2x768xbf16>, vector<768x256xbf16>, vector<2x256xf32> -> vector<2x256xf32>
    %c0_3 = arith.constant 0 : index
    %c0_4 = arith.constant 0 : index
    %4 = vector.load %arg3[%c0_3, %c0_4] : memref<1x256xf32, #tpu.memory_space<vmem>>, vector<1x256xf32>
    %5 = vector.broadcast %4 : vector<1x256xf32> to vector<2x256xf32>
    %6 = arith.addf %3, %5 : vector<2x256xf32>
    %cst_5 = arith.constant 0.000000e+00 : f32
    %7 = vector.broadcast %cst_5 : f32 to vector<2x256xf32>
    %8 = arith.maximumf %6, %7 : vector<2x256xf32>
    %c0_6 = arith.constant 0 : index
    %c0_7 = arith.constant 0 : index
    %9 = vector.load %arg4[%c0_6, %c0_7] : memref<2x256xf32, #tpu.memory_space<vmem>>, vector<2x256xf32>
    tpu.vector_store %arg4[%c0_6, %c0_7], %8 {strides = array<i32>} : memref<2x256xf32, #tpu.memory_space<vmem>>, vector<2x256xf32>,
    return
  }
  func.func @transform_0(%arg0: i32) -> (i32, i32) {
    %c0_i32 = arith.constant 0 : i32
    %c0_i32_0 = arith.constant 0 : i32
    %c0_i32_1 = arith.constant 0 : i32
    return %c0_i32, %c0_i32_0 : i32, i32
  }
  func.func @transform_1(%arg0: i32) -> (i32, i32) {
    %c0_i32 = arith.constant 0 : i32
    %c0_i32_0 = arith.constant 0 : i32
    %c0_i32_1 = arith.constant 0 : i32
    return %c0_i32, %c0_i32_0 : i32, i32
  }
  func.func @transform_2(%arg0: i32) -> (i32, i32) {
    %c0_i32 = arith.constant 0 : i32
    %c0_i32_0 = arith.constant 0 : i32
    %c0_i32_1 = arith.constant 0 : i32
    return %c0_i32, %c0_i32_0 : i32, i32
  }
  func.func @transform_3(%arg0: i32) -> (i32, i32) {
    %c0_i32 = arith.constant 0 : i32
    %c0_i32_0 = arith.constant 0 : i32
    %c0_i32_1 = arith.constant 0 : i32
    return %c0_i32, %c0_i32_0 : i32, i32
  }
}

</mosaic_0001>

<llo_original>
// kernel: tpu_custom_call.1
$region0: #{tpu_custom_call.1}
  #allocation0 [shape = 'u32[]', space=smem, size = 0x4, offset = 0x4, fixed_abs, tag = 'smem constant byte address 0x4 - core index']
  #allocation1 [shape = 'u32[144,128]{1,0:T(1,128)}', space=vmem, size = 0x12000, scoped, tag = 'internal scratch']
  %s0 = inlined_call_operand.hbm [shape: f32[2,768], index: 0, kind: input, shape index: {}]
  %s1 = inlined_call_operand.hbm [shape: bf16[768,256], index: 1, kind: input, shape index: {}]
  %s2 = inlined_call_operand.vmem [shape: f32[1,256], index: 2, kind: input, shape index: {}]
  %s3 = inlined_call_operand.hbm [shape: f32[2,256], index: 3, kind: output, shape index: {}]
  %s4 = sld [smem:[#allocation0]]
  $region30: #{tpu_custom_call.1} parent=0
    _
  %s6 = ssub.s32 1, %s4
  %s7 = scalar_select 0, %s6, %s4
  $region1: #{tpu_custom_call.1} parent=0
    #allocation2 [shape = 'u8[6144]{0}', space=vmem, size = 0x1800, scoped, tag = 'input window, operand 0, single buffered']
    #allocation3 [shape = 's32[1]{0}', space=sflag, size = 0x4, scoped, tag = 'scoped memory for tpu_custom_call.1']
    #allocation4 [shape = 's32[1]{0}', space=sflag, size = 0x4, scoped, tag = 'scoped memory for tpu_custom_call.1']
    #allocation5 [shape = 'u8[393216]{0}', space=vmem, size = 0x60000, scoped, tag = 'input window, operand 1, single buffered']
    #allocation6 [shape = 's32[1]{0}', space=sflag, size = 0x4, scoped, tag = 'scoped memory for tpu_custom_call.1']
    #allocation7 [shape = 'u8[2048]{0}', space=vmem, size = 0x800, scoped, tag = 'output window, operand 0, single buffered']
    %8 = vsyncpa [#allocation3], 0
    %9 = vsyncpa [#allocation6], 0
    %10 = vsyncpa [#allocation4], 0
    // Predicated region
    $region2: #{tpu_custom_call.1} parent=1 // pred_check
      _
    $region3: #{tpu_custom_call.1} parent=1 // pred_check_branch
      %12 = sbr.rel (0) target = $region5
    $region4: #{tpu_custom_call.1} parent=1 // pred_region
      %s14 = ssub.s32 192, 192
      %15 = vsyncadd [#allocation3], %s14
      %s17 = sshll.u32 [#allocation2], 4
      %s18 = int_to_ptr.vmem [resolvable:$true] %s17
      %20 = dma.hbm_to_vmem [thread:$0]  %s0, 192, %s18, [#allocation3]
    $region5: #{tpu_custom_call.1} parent=1 // pred_fallthru
      _
    // Predicated region
    $region6: #{tpu_custom_call.1} parent=1 // pred_check
      _
    $region7: #{tpu_custom_call.1} parent=1 // pred_check_branch
      %22 = sbr.rel (0) target = $region9
    $region8: #{tpu_custom_call.1} parent=1 // pred_region
      %s24 = ssub.s32 12288, 12288
      %25 = vsyncadd [#allocation6], %s24
      %s26 = sshll.u32 [#allocation5], 4
      %s27 = int_to_ptr.vmem [resolvable:$true] %s26
      %32 = dma.hbm_to_vmem [thread:$0]  %s1, 12288, %s27, [#allocation6], 128, 128, 8
    $region9: #{tpu_custom_call.1} parent=1 // pred_fallthru
      _
    // Predicated region
    $region10: #{tpu_custom_call.1} parent=1 // pred_check
      _
    $region11: #{tpu_custom_call.1} parent=1 // pred_check_branch
      %34 = sbr.rel (0) target = $region13
    $region12: #{tpu_custom_call.1} parent=1 // pred_region
      _
    $region13: #{tpu_custom_call.1} parent=1 // pred_fallthru
      _
    // Predicated region
    $region14: #{tpu_custom_call.1} parent=1 // pred_check
      _
    $region15: #{tpu_custom_call.1} parent=1 // pred_check_branch
      %36 = sbr.rel (0) target = $region17
    $region16: #{tpu_custom_call.1} parent=1 // pred_region
      %37 = dma.done [#allocation3], 192
    $region17: #{tpu_custom_call.1} parent=1 // pred_fallthru
      _
    // Predicated region
    $region18: #{tpu_custom_call.1} parent=1 // pred_check
      _
    $region19: #{tpu_custom_call.1} parent=1 // pred_check_branch
      %39 = sbr.rel (0) target = $region21
    $region20: #{tpu_custom_call.1} parent=1 // pred_region
      %40 = dma.done [#allocation6], 12288
    $region21: #{tpu_custom_call.1} parent=1 // pred_fallthru
      _
    %v41 = vld [vmem:[#allocation2] sm:$0xff]
    %v42 = vld [vmem:[#allocation2 + $0x8] sm:$0xf]
    %v45 = vcombine.high %v41, %v41
    %v47 = vunpack.c.l.s4 1983009808
    %v48 = vunpack.c.0.s8 %v47
    %v49 = vlaneseq
    %v50 = vshrl.u32 %v49, 7
    %v51 = vsub.s32 %v48, %v50
    %v52 = vrot.slane %v41, %v51
    %v54 = vunpack.c.l.s4 1983009808
    %v55 = vunpack.c.0.s8 %v54
    %v56 = vlaneseq
    %v57 = vshrl.u32 %v56, 7
    %v58 = vsub.s32 %v55, %v57
    %v59 = vrot.slane %v45, %v58
    %v60 = vcombine.high %v52, %v52
    %v61 = vcombine.high %v59, %v59
    %v63 = vunpack.c.l.s4 1983009808
    %v64 = vunpack.c.0.s8 %v63
    %v65 = vlaneseq
    %v66 = vshrl.u32 %v65, 7
    %v67 = vsub.s32 %v64, %v66
    %v68 = vrot.slane %v42, %v67
    %v69 = vcombine.high %v68, %v68
    %v76 = vpack.c.bf16 %v52, %v52
    %v77 = vpack.c.bf16 %v60, %v60
    %v78 = vpack.c.bf16 %v59, %v59
    %v79 = vpack.c.bf16 %v61, %v61
    %v80 = vpack.c.bf16 %v68, %v68
    %v81 = vpack.c.bf16 %v69, %v69
    %v82 = vld [vmem:[#allocation5] sm:$0xff]
    %v83 = vld [vmem:[#allocation5 + $0x8] sm:$0xff]
    %v84 = vld [vmem:[#allocation5 + $0x10] sm:$0xff]
    %v85 = vld [vmem:[#allocation5 + $0x18] sm:$0xff]
    %v86 = vld [vmem:[#allocation5 + $0x20] sm:$0xff]
    %v87 = vld [vmem:[#allocation5 + $0x28] sm:$0xff]
    %v88 = vld [vmem:[#allocation5 + $0x30] sm:$0xff]
    %v89 = vld [vmem:[#allocation5 + $0x38] sm:$0xff]
    %v90 = vld [vmem:[#allocation5 + $0x40] sm:$0xff]
    %v91 = vld [vmem:[#allocation5 + $0x48] sm:$0xff]
    %v92 = vld [vmem:[#allocation5 + $0x50] sm:$0xff]
    %v93 = vld [vmem:[#allocation5 + $0x58] sm:$0xff]
    %v94 = vld [vmem:[#allocation5 + $0x60] sm:$0xff]
    %v95 = vld [vmem:[#allocation5 + $0x68] sm:$0xff]
    %v96 = vld [vmem:[#allocation5 + $0x70] sm:$0xff]
    %v97 = vld [vmem:[#allocation5 + $0x78] sm:$0xff]
    %v98 = vld [vmem:[#allocation5 + $0x80] sm:$0xff]
    %v99 = vld [vmem:[#allocation5 + $0x88] sm:$0xff]
    %v100 = vld [vmem:[#allocation5 + $0x90] sm:$0xff]
    %v101 = vld [vmem:[#allocation5 + $0x98] sm:$0xff]
    %v102 = vld [vmem:[#allocation5 + $0xa0] sm:$0xff]
    %v103 = vld [vmem:[#allocation5 + $0xa8] sm:$0xff]
    %v104 = vld [vmem:[#allocation5 + $0xb0] sm:$0xff]
    %v105 = vld [vmem:[#allocation5 + $0xb8] sm:$0xff]
    %v106 = vld [vmem:[#allocation5 + $0xc0] sm:$0xff]
    %v107 = vld [vmem:[#allocation5 + $0xc8] sm:$0xff]
    %v108 = vld [vmem:[#allocation5 + $0xd0] sm:$0xff]
    %v109 = vld [vmem:[#allocation5 + $0xd8] sm:$0xff]
    %v110 = vld [vmem:[#allocation5 + $0xe0] sm:$0xff]
    %v111 = vld [vmem:[#allocation5 + $0xe8] sm:$0xff]
    %v112 = vld [vmem:[#allocation5 + $0xf0] sm:$0xff]
    %v113 = vld [vmem:[#allocation5 + $0xf8] sm:$0xff]
    %v114 = vld [vmem:[#allocation5 + $0x100] sm:$0xff]
    %v115 = vld [vmem:[#allocation5 + $0x108] sm:$0xff]
    %v116 = vld [vmem:[#allocation5 + $0x110] sm:$0xff]
    %v117 = vld [vmem:[#allocation5 + $0x118] sm:$0xff]
    %v118 = vld [vmem:[#allocation5 + $0x120] sm:$0xff]
    %v119 = vld [vmem:[#allocation5 + $0x128] sm:$0xff]
    %v120 = vld [vmem:[#allocation5 + $0x130] sm:$0xff]
    %v121 = vld [vmem:[#allocation5 + $0x138] sm:$0xff]
    %v122 = vld [vmem:[#allocation5 + $0x140] sm:$0xff]
    %v123 = vld [vmem:[#allocation5 + $0x148] sm:$0xff]
    %v124 = vld [vmem:[#allocation5 + $0x150] sm:$0xff]
    %v125 = vld [vmem:[#allocation5 + $0x158] sm:$0xff]
    %v126 = vld [vmem:[#allocation5 + $0x160] sm:$0xff]
    %v127 = vld [vmem:[#allocation5 + $0x168] sm:$0xff]
    %v128 = vld [vmem:[#allocation5 + $0x170] sm:$0xff]
    %v129 = vld [vmem:[#allocation5 + $0x178] sm:$0xff]
    %v130 = vld [vmem:[#allocation5 + $0x180] sm:$0xff]
    %v131 = vld [vmem:[#allocation5 + $0x188] sm:$0xff]
    %v132 = vld [vmem:[#allocation5 + $0x190] sm:$0xff]
    %v133 = vld [vmem:[#allocation5 + $0x198] sm:$0xff]
    %v134 = vld [vmem:[#allocation5 + $0x1a0] sm:$0xff]
    %v135 = vld [vmem:[#allocation5 + $0x1a8] sm:$0xff]
    %v136 = vld [vmem:[#allocation5 + $0x1b0] sm:$0xff]
    %v137 = vld [vmem:[#allocation5 + $0x1b8] sm:$0xff]
    %v138 = vld [vmem:[#allocation5 + $0x1c0] sm:$0xff]
    %v139 = vld [vmem:[#allocation5 + $0x1c8] sm:$0xff]
    %v140 = vld [vmem:[#allocation5 + $0x1d0] sm:$0xff]
    %v141 = vld [vmem:[#allocation5 + $0x1d8] sm:$0xff]
    %v142 = vld [vmem:[#allocation5 + $0x1e0] sm:$0xff]
    %v143 = vld [vmem:[#allocation5 + $0x1e8] sm:$0xff]
    %v144 = vld [vmem:[#allocation5 + $0x1f0] sm:$0xff]
    %v145 = vld [vmem:[#allocation5 + $0x1f8] sm:$0xff]
    %v146 = vld [vmem:[#allocation5 + $0x200] sm:$0xff]
    %v147 = vld [vmem:[#allocation5 + $0x208] sm:$0xff]
    %v148 = vld [vmem:[#allocation5 + $0x210] sm:$0xff]
    %v149 = vld [vmem:[#allocation5 + $0x218] sm:$0xff]
    %v150 = vld [vmem:[#allocation5 + $0x220] sm:$0xff]
    %v151 = vld [vmem:[#allocation5 + $0x228] sm:$0xff]
    %v152 = vld [vmem:[#allocation5 + $0x230] sm:$0xff]
    %v153 = vld [vmem:[#allocation5 + $0x238] sm:$0xff]
    %v154 = vld [vmem:[#allocation5 + $0x240] sm:$0xff]
    %v155 = vld [vmem:[#allocation5 + $0x248] sm:$0xff]
    %v156 = vld [vmem:[#allocation5 + $0x250] sm:$0xff]
    %v157 = vld [vmem:[#allocation5 + $0x258] sm:$0xff]
    %v158 = vld [vmem:[#allocation5 + $0x260] sm:$0xff]
    %v159 = vld [vmem:[#allocation5 + $0x268] sm:$0xff]
    %v160 = vld [vmem:[#allocation5 + $0x270] sm:$0xff]
    %v161 = vld [vmem:[#allocation5 + $0x278] sm:$0xff]
    %v162 = vld [vmem:[#allocation5 + $0x280] sm:$0xff]
    %v163 = vld [vmem:[#allocation5 + $0x288] sm:$0xff]
    %v164 = vld [vmem:[#allocation5 + $0x290] sm:$0xff]
    %v165 = vld [vmem:[#allocation5 + $0x298] sm:$0xff]
    %v166 = vld [vmem:[#allocation5 + $0x2a0] sm:$0xff]
    %v167 = vld [vmem:[#allocation5 + $0x2a8] sm:$0xff]
    %v168 = vld [vmem:[#allocation5 + $0x2b0] sm:$0xff]
    %v169 = vld [vmem:[#allocation5 + $0x2b8] sm:$0xff]
    %v170 = vld [vmem:[#allocation5 + $0x2c0] sm:$0xff]
    %v171 = vld [vmem:[#allocation5 + $0x2c8] sm:$0xff]
    %v172 = vld [vmem:[#allocation5 + $0x2d0] sm:$0xff]
    %v173 = vld [vmem:[#allocation5 + $0x2d8] sm:$0xff]
    %v174 = vld [vmem:[#allocation5 + $0x2e0] sm:$0xff]
    %v175 = vld [vmem:[#allocation5 + $0x2e8] sm:$0xff]
    %v176 = vld [vmem:[#allocation5 + $0x2f0] sm:$0xff]
    %v177 = vld [vmem:[#allocation5 + $0x2f8] sm:$0xff]
    %v178 = vld [vmem:[%s2] sm:$0x3]
    %v180 = vlaneseq
    %v181 = vshrl.u32 %v180, 7
    %v182 = vsub.s32 0, %v181
    %v183 = vrot.slane %v178, %v182
    %v184 = vlaneseq
    %v185 = vshrl.u32 %v184, 7
    %v186 = vsub.s32 1, %v185
    %v187 = vrot.slane %v178, %v186
    %v286 = vunpack.c.l.b16 %v82
    %v287 = vunpack.c.h.b16 %v82
    %v288 = vunpack.c.l.b16 %v83
    %v289 = vunpack.c.h.b16 %v83
    %v290 = vunpack.c.l.b16 %v84
    %v291 = vunpack.c.h.b16 %v84
    %v292 = vunpack.c.l.b16 %v85
    %v293 = vunpack.c.h.b16 %v85
    %v294 = vunpack.c.l.b16 %v86
    %v295 = vunpack.c.h.b16 %v86
    %v296 = vunpack.c.l.b16 %v87
    %v297 = vunpack.c.h.b16 %v87
    %v298 = vunpack.c.l.b16 %v88
    %v299 = vunpack.c.h.b16 %v88
    %v300 = vunpack.c.l.b16 %v89
    %v301 = vunpack.c.h.b16 %v89
    %v302 = vunpack.c.l.b16 %v90
    %v303 = vunpack.c.h.b16 %v90
    %v304 = vunpack.c.l.b16 %v91
    %v305 = vunpack.c.h.b16 %v91
    %v306 = vunpack.c.l.b16 %v92
    %v307 = vunpack.c.h.b16 %v92
    %v308 = vunpack.c.l.b16 %v93
    %v309 = vunpack.c.h.b16 %v93
    %v310 = vunpack.c.l.b16 %v94
    %v311 = vunpack.c.h.b16 %v94
    %v312 = vunpack.c.l.b16 %v95
    %v313 = vunpack.c.h.b16 %v95
    %v314 = vunpack.c.l.b16 %v96
    %v315 = vunpack.c.h.b16 %v96
    %v316 = vunpack.c.l.b16 %v97
    %v317 = vunpack.c.h.b16 %v97
    %v318 = vunpack.c.l.b16 %v98
    %v319 = vunpack.c.h.b16 %v98
    %v320 = vunpack.c.l.b16 %v99
    %v321 = vunpack.c.h.b16 %v99
    %v322 = vunpack.c.l.b16 %v100
    %v323 = vunpack.c.h.b16 %v100
    %v324 = vunpack.c.l.b16 %v101
    %v325 = vunpack.c.h.b16 %v101
    %v326 = vunpack.c.l.b16 %v102
    %v327 = vunpack.c.h.b16 %v102
    %v328 = vunpack.c.l.b16 %v103
    %v329 = vunpack.c.h.b16 %v103
    %v330 = vunpack.c.l.b16 %v104
    %v331 = vunpack.c.h.b16 %v104
    %v332 = vunpack.c.l.b16 %v105
    %v333 = vunpack.c.h.b16 %v105
    %v334 = vunpack.c.l.b16 %v106
    %v335 = vunpack.c.h.b16 %v106
    %v336 = vunpack.c.l.b16 %v107
    %v337 = vunpack.c.h.b16 %v107
    %v338 = vunpack.c.l.b16 %v108
    %v339 = vunpack.c.h.b16 %v108
    %v340 = vunpack.c.l.b16 %v109
    %v341 = vunpack.c.h.b16 %v109
    %v342 = vunpack.c.l.b16 %v110
    %v343 = vunpack.c.h.b16 %v110
    %v344 = vunpack.c.l.b16 %v111
    %v345 = vunpack.c.h.b16 %v111
    %v346 = vunpack.c.l.b16 %v112
    %v347 = vunpack.c.h.b16 %v112
    %v348 = vunpack.c.l.b16 %v113
    %v349 = vunpack.c.h.b16 %v113
    %v350 = vunpack.c.l.b16 %v114
    %v351 = vunpack.c.h.b16 %v114
    %v352 = vunpack.c.l.b16 %v115
    %v353 = vunpack.c.h.b16 %v115
    %v354 = vunpack.c.l.b16 %v116
    %v355 = vunpack.c.h.b16 %v116
    %v356 = vunpack.c.l.b16 %v117
    %v357 = vunpack.c.h.b16 %v117
    %v358 = vunpack.c.l.b16 %v118
    %v359 = vunpack.c.h.b16 %v118
    %v360 = vunpack.c.l.b16 %v119
    %v361 = vunpack.c.h.b16 %v119
    %v362 = vunpack.c.l.b16 %v120
    %v363 = vunpack.c.h.b16 %v120
    %v364 = vunpack.c.l.b16 %v121
    %v365 = vunpack.c.h.b16 %v121
    %v366 = vunpack.c.l.b16 %v122
    %v367 = vunpack.c.h.b16 %v122
    %v368 = vunpack.c.l.b16 %v123
    %v369 = vunpack.c.h.b16 %v123
    %v370 = vunpack.c.l.b16 %v124
    %v371 = vunpack.c.h.b16 %v124
    %v372 = vunpack.c.l.b16 %v125
    %v373 = vunpack.c.h.b16 %v125
    %v374 = vunpack.c.l.b16 %v126
    %v375 = vunpack.c.h.b16 %v126
    %v376 = vunpack.c.l.b16 %v127
    %v377 = vunpack.c.h.b16 %v127
    %v378 = vunpack.c.l.b16 %v128
    %v379 = vunpack.c.h.b16 %v128
    %v380 = vunpack.c.l.b16 %v129
    %v381 = vunpack.c.h.b16 %v129
    %v382 = vunpack.c.l.b16 %v130
    %v383 = vunpack.c.h.b16 %v130
    %v384 = vunpack.c.l.b16 %v131
    %v385 = vunpack.c.h.b16 %v131
    %v386 = vunpack.c.l.b16 %v132
    %v387 = vunpack.c.h.b16 %v132
    %v388 = vunpack.c.l.b16 %v133
    %v389 = vunpack.c.h.b16 %v133
    %v390 = vunpack.c.l.b16 %v134
    %v391 = vunpack.c.h.b16 %v134
    %v392 = vunpack.c.l.b16 %v135
    %v393 = vunpack.c.h.b16 %v135
    %v394 = vunpack.c.l.b16 %v136
    %v395 = vunpack.c.h.b16 %v136
    %v396 = vunpack.c.l.b16 %v137
    %v397 = vunpack.c.h.b16 %v137
    %v398 = vunpack.c.l.b16 %v138
    %v399 = vunpack.c.h.b16 %v138
    %v400 = vunpack.c.l.b16 %v139
    %v401 = vunpack.c.h.b16 %v139
    %v402 = vunpack.c.l.b16 %v140
    %v403 = vunpack.c.h.b16 %v140
    %v404 = vunpack.c.l.b16 %v141
    %v405 = vunpack.c.h.b16 %v141
    %v406 = vunpack.c.l.b16 %v142
    %v407 = vunpack.c.h.b16 %v142
    %v408 = vunpack.c.l.b16 %v143
    %v409 = vunpack.c.h.b16 %v143
    %v410 = vunpack.c.l.b16 %v144
    %v411 = vunpack.c.h.b16 %v144
    %v412 = vunpack.c.l.b16 %v145
    %v413 = vunpack.c.h.b16 %v145
    %v414 = vunpack.c.l.b16 %v146
    %v415 = vunpack.c.h.b16 %v146
    %v416 = vunpack.c.l.b16 %v147
    %v417 = vunpack.c.h.b16 %v147
    %v418 = vunpack.c.l.b16 %v148
    %v419 = vunpack.c.h.b16 %v148
    %v420 = vunpack.c.l.b16 %v149
    %v421 = vunpack.c.h.b16 %v149
    %v422 = vunpack.c.l.b16 %v150
    %v423 = vunpack.c.h.b16 %v150
    %v424 = vunpack.c.l.b16 %v151
    %v425 = vunpack.c.h.b16 %v151
    %v426 = vunpack.c.l.b16 %v152
    %v427 = vunpack.c.h.b16 %v152
    %v428 = vunpack.c.l.b16 %v153
    %v429 = vunpack.c.h.b16 %v153
    %v430 = vunpack.c.l.b16 %v154
    %v431 = vunpack.c.h.b16 %v154
    %v432 = vunpack.c.l.b16 %v155
    %v433 = vunpack.c.h.b16 %v155
    %v434 = vunpack.c.l.b16 %v156
    %v435 = vunpack.c.h.b16 %v156
    %v436 = vunpack.c.l.b16 %v157
    %v437 = vunpack.c.h.b16 %v157
    %v438 = vunpack.c.l.b16 %v158
    %v439 = vunpack.c.h.b16 %v158
    %v440 = vunpack.c.l.b16 %v159
    %v441 = vunpack.c.h.b16 %v159
    %v442 = vunpack.c.l.b16 %v160
    %v443 = vunpack.c.h.b16 %v160
    %v444 = vunpack.c.l.b16 %v161
    %v445 = vunpack.c.h.b16 %v161
    %v446 = vunpack.c.l.b16 %v162
    %v447 = vunpack.c.h.b16 %v162
    %v448 = vunpack.c.l.b16 %v163
    %v449 = vunpack.c.h.b16 %v163
    %v450 = vunpack.c.l.b16 %v164
    %v451 = vunpack.c.h.b16 %v164
    %v452 = vunpack.c.l.b16 %v165
    %v453 = vunpack.c.h.b16 %v165
    %v454 = vunpack.c.l.b16 %v166
    %v455 = vunpack.c.h.b16 %v166
    %v456 = vunpack.c.l.b16 %v167
    %v457 = vunpack.c.h.b16 %v167
    %v458 = vunpack.c.l.b16 %v168
    %v459 = vunpack.c.h.b16 %v168
    %v460 = vunpack.c.l.b16 %v169
    %v461 = vunpack.c.h.b16 %v169
    %v462 = vunpack.c.l.b16 %v170
    %v463 = vunpack.c.h.b16 %v170
    %v464 = vunpack.c.l.b16 %v171
    %v465 = vunpack.c.h.b16 %v171
    %v466 = vunpack.c.l.b16 %v172
    %v467 = vunpack.c.h.b16 %v172
    %v468 = vunpack.c.l.b16 %v173
    %v469 = vunpack.c.h.b16 %v173
    %v470 = vunpack.c.l.b16 %v174
    %v471 = vunpack.c.h.b16 %v174
    %v472 = vunpack.c.l.b16 %v175
    %v473 = vunpack.c.h.b16 %v175
    %v474 = vunpack.c.l.b16 %v176
    %v475 = vunpack.c.h.b16 %v176
    %v476 = vunpack.c.l.b16 %v177
    %v477 = vunpack.c.h.b16 %v177
    %v478 = vpack.c.b16 %v288, %v286
    %v479 = vpack.c.b16 %v289, %v287
    %v480 = vpack.c.b16 %v292, %v290
    %v481 = vpack.c.b16 %v293, %v291
    %v482 = vpack.c.b16 %v296, %v294
    %v483 = vpack.c.b16 %v297, %v295
    %v484 = vpack.c.b16 %v300, %v298
    %v485 = vpack.c.b16 %v301, %v299
    %v486 = vpack.c.b16 %v304, %v302
    %v487 = vpack.c.b16 %v305, %v303
    %v488 = vpack.c.b16 %v308, %v306
    %v489 = vpack.c.b16 %v309, %v307
    %v490 = vpack.c.b16 %v312, %v310
    %v491 = vpack.c.b16 %v313, %v311
    %v492 = vpack.c.b16 %v316, %v314
    %v493 = vpack.c.b16 %v317, %v315
    %v494 = vpack.c.b16 %v320, %v318
    %v495 = vpack.c.b16 %v321, %v319
    %v496 = vpack.c.b16 %v324, %v322
    %v497 = vpack.c.b16 %v325, %v323
    %v498 = vpack.c.b16 %v328, %v326
    %v499 = vpack.c.b16 %v329, %v327
    %v500 = vpack.c.b16 %v332, %v330
    %v501 = vpack.c.b16 %v333, %v331
    %v502 = vpack.c.b16 %v336, %v334
    %v503 = vpack.c.b16 %v337, %v335
    %v504 = vpack.c.b16 %v340, %v338
    %v505 = vpack.c.b16 %v341, %v339
    %v506 = vpack.c.b16 %v344, %v342
    %v507 = vpack.c.b16 %v345, %v343
    %v508 = vpack.c.b16 %v348, %v346
    %v509 = vpack.c.b16 %v349, %v347
    %v510 = vpack.c.b16 %v352, %v350
    %v511 = vpack.c.b16 %v353, %v351
    %v512 = vpack.c.b16 %v356, %v354
    %v513 = vpack.c.b16 %v357, %v355
    %v514 = vpack.c.b16 %v360, %v358
    %v515 = vpack.c.b16 %v361, %v359
    %v516 = vpack.c.b16 %v364, %v362
    %v517 = vpack.c.b16 %v365, %v363
    %v518 = vpack.c.b16 %v368, %v366
    %v519 = vpack.c.b16 %v369, %v367
    %v520 = vpack.c.b16 %v372, %v370
    %v521 = vpack.c.b16 %v373, %v371
    %v522 = vpack.c.b16 %v376, %v374
    %v523 = vpack.c.b16 %v377, %v375
    %v524 = vpack.c.b16 %v380, %v378
    %v525 = vpack.c.b16 %v381, %v379
    %v526 = vpack.c.b16 %v384, %v382
    %v527 = vpack.c.b16 %v385, %v383
    %v528 = vpack.c.b16 %v388, %v386
    %v529 = vpack.c.b16 %v389, %v387
    %v530 = vpack.c.b16 %v392, %v390
    %v531 = vpack.c.b16 %v393, %v391
    %v532 = vpack.c.b16 %v396, %v394
    %v533 = vpack.c.b16 %v397, %v395
    %v534 = vpack.c.b16 %v400, %v398
    %v535 = vpack.c.b16 %v401, %v399
    %v536 = vpack.c.b16 %v404, %v402
    %v537 = vpack.c.b16 %v405, %v403
    %v538 = vpack.c.b16 %v408, %v406
    %v539 = vpack.c.b16 %v409, %v407
    %v540 = vpack.c.b16 %v412, %v410
    %v541 = vpack.c.b16 %v413, %v411
    %v542 = vpack.c.b16 %v416, %v414
    %v543 = vpack.c.b16 %v417, %v415
    %v544 = vpack.c.b16 %v420, %v418
    %v545 = vpack.c.b16 %v421, %v419
    %v546 = vpack.c.b16 %v424, %v422
    %v547 = vpack.c.b16 %v425, %v423
    %v548 = vpack.c.b16 %v428, %v426
    %v549 = vpack.c.b16 %v429, %v427
    %v550 = vpack.c.b16 %v432, %v430
    %v551 = vpack.c.b16 %v433, %v431
    %v552 = vpack.c.b16 %v436, %v434
    %v553 = vpack.c.b16 %v437, %v435
    %v554 = vpack.c.b16 %v440, %v438
    %v555 = vpack.c.b16 %v441, %v439
    %v556 = vpack.c.b16 %v444, %v442
    %v557 = vpack.c.b16 %v445, %v443
    %v558 = vpack.c.b16 %v448, %v446
    %v559 = vpack.c.b16 %v449, %v447
    %v560 = vpack.c.b16 %v452, %v450
    %v561 = vpack.c.b16 %v453, %v451
    %v562 = vpack.c.b16 %v456, %v454
    %v563 = vpack.c.b16 %v457, %v455
    %v564 = vpack.c.b16 %v460, %v458
    %v565 = vpack.c.b16 %v461, %v459
    %v566 = vpack.c.b16 %v464, %v462
    %v567 = vpack.c.b16 %v465, %v463
    %v568 = vpack.c.b16 %v468, %v466
    %v569 = vpack.c.b16 %v469, %v467
    %v570 = vpack.c.b16 %v472, %v470
    %v571 = vpack.c.b16 %v473, %v471
    %v572 = vpack.c.b16 %v476, %v474
    %v573 = vpack.c.b16 %v477, %v475
    %670 = vmatprep.subr.bf16.mxu0 %v493
    %671 = vmatpush1.bf16.msra.mxu0 %v492
    %672 = vmatprep.subr.bf16.mxu0 %v491
    %673 = vmatpush1.bf16.msra.mxu0 %v490
    %674 = vmatprep.subr.bf16.mxu0 %v489
    %675 = vmatpush1.bf16.msra.mxu0 %v488
    %676 = vmatprep.subr.bf16.mxu0 %v487
    %677 = vmatpush1.bf16.msra.mxu0 %v486
    %678 = vmatprep.subr.bf16.mxu0 %v485
    %679 = vmatpush1.bf16.msra.mxu0 %v484
    %680 = vmatprep.subr.bf16.mxu0 %v483
    %681 = vmatpush1.bf16.msra.mxu0 %v482
    %682 = vmatprep.subr.bf16.mxu0 %v481
    %683 = vmatpush1.bf16.msra.mxu0 %v480
    %684 = vmatprep.subr.bf16.mxu0 %v479
    %685 = vmatpush1.bf16.msra.mxu0 %v478
    %686 = vmatprep.subr.bf16.mxu0 %v509
    %687 = vmatpush2.bf16.msra.mxu0 %v508
    %688 = vmatprep.subr.bf16.mxu0 %v507
    %689 = vmatpush2.bf16.msra.mxu0 %v506
    %690 = vmatprep.subr.bf16.mxu0 %v505
    %691 = vmatpush2.bf16.msra.mxu0 %v504
    %692 = vmatprep.subr.bf16.mxu0 %v503
    %693 = vmatpush2.bf16.msra.mxu0 %v502
    %694 = vmatprep.subr.bf16.mxu0 %v501
    %695 = vmatpush2.bf16.msra.mxu0 %v500
    %696 = vmatprep.subr.bf16.mxu0 %v499
    %697 = vmatpush2.bf16.msra.mxu0 %v498
    %698 = vmatprep.subr.bf16.mxu0 %v497
    %699 = vmatpush2.bf16.msra.mxu0 %v496
    %700 = vmatprep.subr.bf16.mxu0 %v495
    %701 = vmatpush2.bf16.msra.mxu0 %v494
    %702 = vmatprep.mubr.bf16.mxu0 %v77
    %703 = vmatmul.mubr.bf16.gmra.mxu0 %v76
    %v704 = vpop.f32.mrf.mxu0
    %v705 = vadd.f32 %v183, %v704
    %v706 = vpop.f32.mrf.mxu0
    %v707 = vadd.f32 %v187, %v706
    %v708 = vpop.f32.mrf.mxu0
    %v709 = vpop.f32.mrf.mxu0
    %710 = vdwg.mxu0
    %711 = vmatprep.subr.bf16.mxu0 %v525
    %712 = vmatpush1.bf16.msra.mxu0 %v524
    %713 = vmatprep.subr.bf16.mxu0 %v523
    %714 = vmatpush1.bf16.msra.mxu0 %v522
    %715 = vmatprep.subr.bf16.mxu0 %v521
    %716 = vmatpush1.bf16.msra.mxu0 %v520
    %717 = vmatprep.subr.bf16.mxu0 %v519
    %718 = vmatpush1.bf16.msra.mxu0 %v518
    %719 = vmatprep.subr.bf16.mxu0 %v517
    %720 = vmatpush1.bf16.msra.mxu0 %v516
    %721 = vmatprep.subr.bf16.mxu0 %v515
    %722 = vmatpush1.bf16.msra.mxu0 %v514
    %723 = vmatprep.subr.bf16.mxu0 %v513
    %724 = vmatpush1.bf16.msra.mxu0 %v512
    %725 = vmatprep.subr.bf16.mxu0 %v511
    %726 = vmatpush1.bf16.msra.mxu0 %v510
    %727 = vmatprep.subr.bf16.mxu0 %v541
    %728 = vmatpush2.bf16.msra.mxu0 %v540
    %729 = vmatprep.subr.bf16.mxu0 %v539
    %730 = vmatpush2.bf16.msra.mxu0 %v538
    %731 = vmatprep.subr.bf16.mxu0 %v537
    %732 = vmatpush2.bf16.msra.mxu0 %v536
    %733 = vmatprep.subr.bf16.mxu0 %v535
    %734 = vmatpush2.bf16.msra.mxu0 %v534
    %735 = vmatprep.subr.bf16.mxu0 %v533
    %736 = vmatpush2.bf16.msra.mxu0 %v532
    %737 = vmatprep.subr.bf16.mxu0 %v531
    %738 = vmatpush2.bf16.msra.mxu0 %v530
    %739 = vmatprep.subr.bf16.mxu0 %v529
    %740 = vmatpush2.bf16.msra.mxu0 %v528
    %741 = vmatprep.subr.bf16.mxu0 %v527
    %742 = vmatpush2.bf16.msra.mxu0 %v526
    %743 = vmatprep.mubr.bf16.mxu0 %v79
    %744 = vmatmul.mubr.bf16.gmra.mxu0 %v78
    %v745 = vpop.f32.mrf.mxu0
    %v746 = vadd.f32 %v705, %v745
    %v747 = vpop.f32.mrf.mxu0
    %v748 = vadd.f32 %v707, %v747
    %v749 = vpop.f32.mrf.mxu0
    %v750 = vpop.f32.mrf.mxu0
    %751 = vdwg.mxu0
    %752 = vmatprep.subr.bf16.mxu0 %v557
    %753 = vmatpush1.bf16.msra.mxu0 %v556
    %754 = vmatprep.subr.bf16.mxu0 %v555
    %755 = vmatpush1.bf16.msra.mxu0 %v554
    %756 = vmatprep.subr.bf16.mxu0 %v553
    %757 = vmatpush1.bf16.msra.mxu0 %v552
    %758 = vmatprep.subr.bf16.mxu0 %v551
    %759 = vmatpush1.bf16.msra.mxu0 %v550
    %760 = vmatprep.subr.bf16.mxu0 %v549
    %761 = vmatpush1.bf16.msra.mxu0 %v548
    %762 = vmatprep.subr.bf16.mxu0 %v547
    %763 = vmatpush1.bf16.msra.mxu0 %v546
    %764 = vmatprep.subr.bf16.mxu0 %v545
    %765 = vmatpush1.bf16.msra.mxu0 %v544
    %766 = vmatprep.subr.bf16.mxu0 %v543
    %767 = vmatpush1.bf16.msra.mxu0 %v542
    %768 = vmatprep.subr.bf16.mxu0 %v573
    %769 = vmatpush2.bf16.msra.mxu0 %v572
    %770 = vmatprep.subr.bf16.mxu0 %v571
    %771 = vmatpush2.bf16.msra.mxu0 %v570
    %772 = vmatprep.subr.bf16.mxu0 %v569
    %773 = vmatpush2.bf16.msra.mxu0 %v568
    %774 = vmatprep.subr.bf16.mxu0 %v567
    %775 = vmatpush2.bf16.msra.mxu0 %v566
    %776 = vmatprep.subr.bf16.mxu0 %v565
    %777 = vmatpush2.bf16.msra.mxu0 %v564
    %778 = vmatprep.subr.bf16.mxu0 %v563
    %779 = vmatpush2.bf16.msra.mxu0 %v562
    %780 = vmatprep.subr.bf16.mxu0 %v561
    %781 = vmatpush2.bf16.msra.mxu0 %v560
    %782 = vmatprep.subr.bf16.mxu0 %v559
    %783 = vmatpush2.bf16.msra.mxu0 %v558
    %784 = vmatprep.mubr.bf16.mxu0 %v81
    %785 = vmatmul.mubr.bf16.gmra.mxu0 %v80
    %v786 = vpop.f32.mrf.mxu0
    %v787 = vadd.f32 %v746, %v786
    %v788 = vpop.f32.mrf.mxu0
    %v789 = vadd.f32 %v748, %v788
    %v790 = vpop.f32.mrf.mxu0
    %v791 = vpop.f32.mrf.mxu0
    %792 = vdwg.mxu0
    %v793 = vmax.f32 %v787, 0.0
    %v794 = vmax.f32 %v789, 0.0
    %v797 = vcombine.low %v793, %v794
    %v799 = vunpack.c.l.s4 1983009808
    %v800 = vunpack.c.0.s8 %v799
    %v801 = vlaneseq
    %v802 = vshrl.u32 %v801, 7
    %v803 = vsub.s32 %v800, %v802
    %v804 = vrot.slane %v797, %v803
    %806 = vst [vmem:[#allocation7] sm:$0xf] %v804
    // Predicated region
    $region22: #{tpu_custom_call.1} parent=1 // pred_check
      _
    $region23: #{tpu_custom_call.1} parent=1 // pred_check_branch
      %808 = sbr.rel (0) target = $region25
    $region24: #{tpu_custom_call.1} parent=1 // pred_region
      %s810 = ssub.s32 64, 64
      %811 = vsyncadd [#allocation4], %s810
      %s813 = sshll.u32 [#allocation7], 4
      %s814 = int_to_ptr.vmem [resolvable:$true] %s813
      %816 = dma.vmem_to_hbm [thread:$0]  %s814, 64, %s3, [#allocation4]
    $region25: #{tpu_custom_call.1} parent=1 // pred_fallthru
      _
    // Predicated region
    $region26: #{tpu_custom_call.1} parent=1 // pred_check
      _
    $region27: #{tpu_custom_call.1} parent=1 // pred_check_branch
      %818 = sbr.rel (0) target = $region29
    $region28: #{tpu_custom_call.1} parent=1 // pred_region
      %819 = dma.done [#allocation4], 64
    $region29: #{tpu_custom_call.1} parent=1 // pred_fallthru
      _
    %820 = vsyncpa [#allocation3], 1
    %821 = vsyncpa [#allocation6], 1
    %822 = vsyncpa [#allocation4], 1

</llo_original>
